<compile_context>
chip_gen: v7x
topology: tpu7x:2x2x1
jax: 0.10.0
libtpu: 0.0.40
codegen_flags: <defaults>
</compile_context>

<pallas_src>
import jax
import jax.numpy as jnp
from jax.experimental import pallas as pl
from jax.experimental.pallas import tpu as pltpu

IN_FEATURES = 4
HIDDEN = 256
LANE = 128
MIN_SUBLANE = 8
MAX_TILE_B = 1024   # per-step VMEM footprint stays tiny; safe on v7x's 64 MiB


def _round_up(n, m):
    return ((n + m - 1) // m) * m


def dqn_kernel(x_ref, w1_ref, b1_ref, w2_ref, b2_ref, o_ref):
    """relu(x @ w1 + b1) @ w2 + b2 for one batch tile.

    fc1 (K=4) runs on the VPU as an unrolled outer-product accumulation so the
    MXU only runs fc2. fc2 uses MXU-native operands (bf16 by default) with f32
    accumulation; bias-add / ReLU stay f32.
    """
    n_out = o_ref.shape[-1]
    x = x_ref[...].astype(jnp.float32)                # (tile_b, 4)
    w1 = w1_ref[...]                                  # (4, 256) f32, VMEM-resident
    # fc1 on the VPU: lane-broadcast x[:, k] times sublane-broadcast w1[k, :],
    # 4 mul/adds per (8,128) vreg — hides under fc2's vmatmul stream.
    h = b1_ref[...] + x[:, 0:1] * w1[0:1, :]
    for k in range(1, IN_FEATURES):
        h = h + x[:, k:k + 1] * w1[k:k + 1, :]
    h = jnp.maximum(h, 0.0)
    # fc2 on the MXU: (tile_b, 256) @ (256, 128-padded), f32 accumulate.
    q = jnp.dot(h.astype(w2_ref.dtype), w2_ref[...],
                preferred_element_type=jnp.float32)
    q = q + b2_ref[...]
    # Store only the real action columns (narrow output array => ~64x less
    # HBM writeback for tiny n_actions; masked vst in VMEM is cheap here).
    o_ref[...] = q[:, :n_out].astype(o_ref.dtype)


def dqn_forward(x, w1, b1, w2, b2, *, tile_b=None, mxu_dtype=jnp.bfloat16):
    """DQN forward pass: relu(x @ w1 + b1) @ w2 + b2.

    x : [B, 4] float32
    w1: [4, 256], b1: [1, 256] (or [256])
    w2: [256, n_actions], b2: [1, n_actions] (or [n_actions])
    Returns Q-values [B, n_actions] in x.dtype.
    """
    B = x.shape[0]
    n_actions = w2.shape[-1]

    # fc1 runs on the VPU in f32 (correct on v5e too, which has no bf16 VPU).
    w1 = w1.astype(jnp.float32)
    b1 = b1.reshape(1, HIDDEN).astype(jnp.float32)
    # fc2 runs on the MXU; bf16 operands are MXU-native on all generations
    # (f32 matmuls decompose into multiple passes on v5e), f32 accumulation.
    w2 = w2.astype(mxu_dtype)
    b2 = b2.reshape(1, n_actions).astype(jnp.float32)

    # Pad fc2 weight lanes to 128 so the MXU result slab is lane-dense in VMEM;
    # only the real n_actions columns are ever written back to HBM.
    out_pad = _round_up(n_actions, LANE)
    if out_pad != n_actions:
        w2 = jnp.pad(w2, ((0, 0), (0, out_pad - n_actions)))
        b2 = jnp.pad(b2, ((0, 0), (0, out_pad - n_actions)))

    # Batch tiling: sublane axis must be a multiple of 8. Default to ~B/2 rows
    # per tile (>=2 grid steps) so both v7x TensorCores get work, capped at
    # MAX_TILE_B to amortize the ~0.35 us per-step overhead without bloating VMEM.
    if tile_b is None:
        b8 = _round_up(max(B, 1), MIN_SUBLANE)
        half = _round_up(-(-b8 // 2), MIN_SUBLANE)
        tile_b = max(MIN_SUBLANE, min(MAX_TILE_B, half))
    tile_b = _round_up(tile_b, MIN_SUBLANE)
    b_pad = _round_up(B, tile_b)
    if b_pad != B:
        x = jnp.pad(x, ((0, b_pad - B), (0, 0)))
    num_tiles = b_pad // tile_b

    # TODO(synk): x's (tile_b, 4) block is lane-sparse in VMEM; repack to a
    # lane-dense layout in the wrapper only if the input DMA shows up as
    # exposed time at very large tile_b.

    itemsize = jnp.dtype(x.dtype).itemsize
    cost = pl.CostEstimate(
        flops=2 * b_pad * (IN_FEATURES * HIDDEN + HIDDEN * out_pad),
        transcendentals=0,
        bytes_accessed=(b_pad * IN_FEATURES * itemsize
                        + IN_FEATURES * HIDDEN * 4 + HIDDEN * 4
                        + HIDDEN * out_pad * jnp.dtype(mxu_dtype).itemsize
                        + out_pad * 4
                        + b_pad * n_actions * itemsize),
    )

    q_pad = pl.pallas_call(
        dqn_kernel,
        out_shape=jax.ShapeDtypeStruct((b_pad, n_actions), x.dtype),
        grid=(num_tiles,),
        in_specs=[
            pl.BlockSpec((tile_b, IN_FEATURES), lambda i: (i, 0)),  # x: batch-tiled
            pl.BlockSpec((IN_FEATURES, HIDDEN), lambda i: (0, 0)),  # w1: VMEM-resident
            pl.BlockSpec((1, HIDDEN), lambda i: (0, 0)),            # b1
            pl.BlockSpec((HIDDEN, out_pad), lambda i: (0, 0)),      # w2 (lane-padded)
            pl.BlockSpec((1, out_pad), lambda i: (0, 0)),           # b2 (lane-padded)
        ],
        # Narrow output: last block dim == full array dim (legal), huge
        # writeback savings for small n_actions.
        out_specs=pl.BlockSpec((tile_b, n_actions), lambda i: (i, 0)),
        compiler_params=pltpu.CompilerParams(
            dimension_semantics=("parallel",),        # shard batch tiles across TCs
            vmem_limit_bytes=32 * 1024 * 1024),
        cost_estimate=cost,
    )(x, w1, b1, w2, b2)

    return q_pad[:B]


def init_params(key, n_actions):
    """Deterministic init matching the nn.Linear shapes (transposed layout)."""
    k1, k2, k3, k4 = jax.random.split(key, 4)
    bound1 = 1.0 / jnp.sqrt(4.0)
    bound2 = 1.0 / jnp.sqrt(256.0)
    w1 = jax.random.uniform(k1, (IN_FEATURES, HIDDEN), jnp.float32, -bound1, bound1)
    b1 = jax.random.uniform(k2, (1, HIDDEN), jnp.float32, -bound1, bound1)
    w2 = jax.random.uniform(k3, (HIDDEN, n_actions), jnp.float32, -bound2, bound2)
    b2 = jax.random.uniform(k4, (1, n_actions), jnp.float32, -bound2, bound2)
    return w1, b1, w2, b2


if __name__ == "__main__":
    key = jax.random.PRNGKey(0)
    kx, kp, kx2 = jax.random.split(key, 3)

    batch = 2
    n_actions = 2  # env_config['n_actions'] — small synthetic choice

    x = jax.random.normal(kx, (batch, IN_FEATURES), jnp.float32)
    w1, b1, w2, b2 = init_params(kp, n_actions)

    def ref_fwd(xv):
        h = jnp.maximum(jnp.dot(xv, w1, precision='highest') + b1, 0.0)
        return jnp.dot(h, w2, precision='highest') + b2

    # --- f32-MXU path (tight tolerance), tiny batch padded to 8 sublanes ---
    q32 = jax.block_until_ready(dqn_forward(x, w1, b1, w2, b2,
                                            mxu_dtype=jnp.float32))
    assert q32.shape == (batch, n_actions)
    assert jnp.allclose(q32, ref_fwd(x), atol=1e-4, rtol=1e-4), "f32 mismatch"

    # --- default bf16-MXU path (gated tolerance) ---
    q = jax.block_until_ready(dqn_forward(x, w1, b1, w2, b2))
    assert q.shape == (batch, n_actions)
    assert jnp.allclose(q, ref_fwd(x), atol=5e-2, rtol=5e-2), "bf16 mismatch"

    # --- non-multiple-of-8 batch exercising the default 2-tile grid / padding ---
    x_big = jax.random.normal(kx2, (300, IN_FEATURES), jnp.float32)
    q_big = jax.block_until_ready(dqn_forward(x_big, w1, b1, w2, b2))
    assert q_big.shape == (300, n_actions)
    assert jnp.allclose(q_big, ref_fwd(x_big), atol=5e-2, rtol=5e-2), "tiled mismatch"

    # TODO(synk): act()'s epsilon-greedy sampling / argmax is host-side control
    # flow and is not kernelized; for B~1 online act() the Q argmax is left to
    # XLA outside the kernel.
    print("KERNEL_OK")
</pallas_src>

<mosaic_0001>
module attributes {stable_mosaic.version = 11 : i64} {
  func.func @dqn_kernel(%arg0: i32, %arg1: memref<8x4xf32, #tpu.memory_space<vmem>>, %arg2: memref<4x256xf32, #tpu.memory_space<vmem>>, %arg3: memref<1x256xf32, #tpu.memory_space<vmem>>, %arg4: memref<256x128xf32, #tpu.memory_space<vmem>>, %arg5: memref<1x128xf32, #tpu.memory_space<vmem>>, %arg6: memref<8x2xf32, #tpu.memory_space<vmem>>) attributes {dimension_semantics = [#tpu.dimension_semantics<parallel>], iteration_bounds = array<i64: 1>, scalar_prefetch = 0 : i64, scratch_operands = 0 : i64, tpu.core_type = #tpu.core_type<tc>, window_params = [{transform_indices = @transform_0, window_bounds = array<i64: 8, 4>}, {pipeline_mode = #tpu.pipeline_mode<synchronous>, transform_indices = @transform_1, window_bounds = array<i64: 4, 256>}, {pipeline_mode = #tpu.pipeline_mode<synchronous>, transform_indices = @transform_2, window_bounds = array<i64: 1, 256>}, {pipeline_mode = #tpu.pipeline_mode<synchronous>, transform_indices = @transform_3, window_bounds = array<i64: 256, 128>}, {pipeline_mode = #tpu.pipeline_mode<synchronous>, transform_indices = @transform_4, window_bounds = array<i64: 1, 128>}, {transform_indices = @transform_5, window_bounds = array<i64: 8, 2>}]} {
    %c0 = arith.constant 0 : index
    %c0_0 = arith.constant 0 : index
    %0 = vector.load %arg1[%c0, %c0_0] : memref<8x4xf32, #tpu.memory_space<vmem>>, vector<8x4xf32>
    %c0_1 = arith.constant 0 : index
    %c0_2 = arith.constant 0 : index
    %1 = vector.load %arg2[%c0_1, %c0_2] : memref<4x256xf32, #tpu.memory_space<vmem>>, vector<4x256xf32>
    %c0_3 = arith.constant 0 : index
    %c0_4 = arith.constant 0 : index
    %2 = vector.load %arg3[%c0_3, %c0_4] : memref<1x256xf32, #tpu.memory_space<vmem>>, vector<1x256xf32>
    %3 = vector.extract_strided_slice %0 {offsets = [0, 0], sizes = [8, 1], strides = [1, 1]} : vector<8x4xf32> to vector<8x1xf32>
    %4 = vector.extract_strided_slice %1 {offsets = [0, 0], sizes = [1, 256], strides = [1, 1]} : vector<4x256xf32> to vector<1x256xf32>
    %5 = vector.broadcast %3 : vector<8x1xf32> to vector<8x256xf32>
    %6 = vector.broadcast %4 : vector<1x256xf32> to vector<8x256xf32>
    %7 = arith.mulf %5, %6 : vector<8x256xf32>
    %8 = vector.broadcast %2 : vector<1x256xf32> to vector<8x256xf32>
    %9 = arith.addf %8, %7 : vector<8x256xf32>
    %10 = vector.extract_strided_slice %0 {offsets = [0, 1], sizes = [8, 1], strides = [1, 1]} : vector<8x4xf32> to vector<8x1xf32>
    %11 = vector.extract_strided_slice %1 {offsets = [1, 0], sizes = [1, 256], strides = [1, 1]} : vector<4x256xf32> to vector<1x256xf32>
    %12 = vector.broadcast %10 : vector<8x1xf32> to vector<8x256xf32>
    %13 = vector.broadcast %11 : vector<1x256xf32> to vector<8x256xf32>
    %14 = arith.mulf %12, %13 : vector<8x256xf32>
    %15 = arith.addf %9, %14 : vector<8x256xf32>
    %16 = vector.extract_strided_slice %0 {offsets = [0, 2], sizes = [8, 1], strides = [1, 1]} : vector<8x4xf32> to vector<8x1xf32>
    %17 = vector.extract_strided_slice %1 {offsets = [2, 0], sizes = [1, 256], strides = [1, 1]} : vector<4x256xf32> to vector<1x256xf32>
    %18 = vector.broadcast %16 : vector<8x1xf32> to vector<8x256xf32>
    %19 = vector.broadcast %17 : vector<1x256xf32> to vector<8x256xf32>
    %20 = arith.mulf %18, %19 : vector<8x256xf32>
    %21 = arith.addf %15, %20 : vector<8x256xf32>
    %22 = vector.extract_strided_slice %0 {offsets = [0, 3], sizes = [8, 1], strides = [1, 1]} : vector<8x4xf32> to vector<8x1xf32>
    %23 = vector.extract_strided_slice %1 {offsets = [3, 0], sizes = [1, 256], strides = [1, 1]} : vector<4x256xf32> to vector<1x256xf32>
    %24 = vector.broadcast %22 : vector<8x1xf32> to vector<8x256xf32>
    %25 = vector.broadcast %23 : vector<1x256xf32> to vector<8x256xf32>
    %26 = arith.mulf %24, %25 : vector<8x256xf32>
    %27 = arith.addf %21, %26 : vector<8x256xf32>
    %cst = arith.constant 0.000000e+00 : f32
    %28 = vector.broadcast %cst : f32 to vector<8x256xf32>
    %29 = arith.maximumf %27, %28 : vector<8x256xf32>
    %c0_5 = arith.constant 0 : index
    %c0_6 = arith.constant 0 : index
    %30 = vector.load %arg4[%c0_5, %c0_6] : memref<256x128xf32, #tpu.memory_space<vmem>>, vector<256x128xf32>
    %cst_7 = arith.constant dense<0.000000e+00> : vector<8x128xf32>
    %31 = tpu.matmul %29, %30, %cst_7 {dimension_numbers = #tpu.dot_dimension_numbers<[1], [0], [0], [1], [0, 0, 1, 1], [], []>} : vector<8x256xf32>, vector<256x128xf32>, vector<8x128xf32> -> vector<8x128xf32>
    %c0_8 = arith.constant 0 : index
    %c0_9 = arith.constant 0 : index
    %32 = vector.load %arg5[%c0_8, %c0_9] : memref<1x128xf32, #tpu.memory_space<vmem>>, vector<1x128xf32>
    %33 = vector.broadcast %32 : vector<1x128xf32> to vector<8x128xf32>
    %34 = arith.addf %31, %33 : vector<8x128xf32>
    %35 = vector.extract_strided_slice %34 {offsets = [0, 0], sizes = [8, 2], strides = [1, 1]} : vector<8x128xf32> to vector<8x2xf32>
    %c0_10 = arith.constant 0 : index
    %c0_11 = arith.constant 0 : index
    %36 = vector.load %arg6[%c0_10, %c0_11] : memref<8x2xf32, #tpu.memory_space<vmem>>, vector<8x2xf32>
    tpu.vector_store %arg6[%c0_10, %c0_11], %35 {strides = array<i32>} : memref<8x2xf32, #tpu.memory_space<vmem>>, vector<8x2xf32>,
    return
  }
  func.func @transform_0(%arg0: i32) -> (i32, i32) {
    %c0_i32 = arith.constant 0 : i32
    %c0_i32_0 = arith.constant 0 : i32
    return %arg0, %c0_i32 : i32, i32
  }
  func.func @transform_1(%arg0: i32) -> (i32, i32) {
    %c0_i32 = arith.constant 0 : i32
    %c0_i32_0 = arith.constant 0 : i32
    %c0_i32_1 = arith.constant 0 : i32
    return %c0_i32, %c0_i32_0 : i32, i32
  }
  func.func @transform_2(%arg0: i32) -> (i32, i32) {
    %c0_i32 = arith.constant 0 : i32
    %c0_i32_0 = arith.constant 0 : i32
    %c0_i32_1 = arith.constant 0 : i32
    return %c0_i32, %c0_i32_0 : i32, i32
  }
  func.func @transform_3(%arg0: i32) -> (i32, i32) {
    %c0_i32 = arith.constant 0 : i32
    %c0_i32_0 = arith.constant 0 : i32
    %c0_i32_1 = arith.constant 0 : i32
    return %c0_i32, %c0_i32_0 : i32, i32
  }
  func.func @transform_4(%arg0: i32) -> (i32, i32) {
    %c0_i32 = arith.constant 0 : i32
    %c0_i32_0 = arith.constant 0 : i32
    %c0_i32_1 = arith.constant 0 : i32
    return %c0_i32, %c0_i32_0 : i32, i32
  }
  func.func @transform_5(%arg0: i32) -> (i32, i32) {
    %c0_i32 = arith.constant 0 : i32
    %c0_i32_0 = arith.constant 0 : i32
    return %arg0, %c0_i32 : i32, i32
  }
}

</mosaic_0001>

<llo_original>
// kernel: tpu_custom_call.1
$region0: #{tpu_custom_call.1}
  #allocation0 [shape = 'u32[]', space=smem, size = 0x4, offset = 0x4, fixed_abs, tag = 'smem constant byte address 0x4 - core index']
  #allocation1 [shape = 'u32[144,128]{1,0:T(1,128)}', space=vmem, size = 0x12000, scoped, tag = 'internal scratch']
  %s0 = inlined_call_operand.vmem [shape: f32[8,4], index: 0, kind: input, shape index: {}]
  %s1 = inlined_call_operand.vmem [shape: f32[4,256], index: 1, kind: input, shape index: {}]
  %s2 = inlined_call_operand.vmem [shape: f32[1,256], index: 2, kind: input, shape index: {}]
  %s3 = inlined_call_operand.hbm [shape: f32[256,128], index: 3, kind: input, shape index: {}]
  %s4 = inlined_call_operand.vmem [shape: f32[1,128], index: 4, kind: input, shape index: {}]
  %s5 = inlined_call_operand.vmem [shape: f32[8,2], index: 5, kind: output, shape index: {}]
  %s6 = sld [smem:[#allocation0]]
  $region34: #{tpu_custom_call.1} parent=0
    _
  %s8 = ssub.s32 1, %s6
  %s9 = scalar_select 0, %s8, %s6
  $region1: #{tpu_custom_call.1} parent=0
    #allocation2 [shape = 'u8[131072]{0}', space=vmem, size = 0x20000, scoped, tag = 'input window, operand 3, single buffered']
    #allocation3 [shape = 's32[1]{0}', space=sflag, size = 0x4, scoped, tag = 'scoped memory for tpu_custom_call.1']
    %10 = vsyncpa [#allocation3], 0
    // Predicated region
    $region2: #{tpu_custom_call.1} parent=1 // pred_check
      _
    $region3: #{tpu_custom_call.1} parent=1 // pred_check_branch
      %12 = sbr.rel (0) target = $region5
    $region4: #{tpu_custom_call.1} parent=1 // pred_region
      _
    $region5: #{tpu_custom_call.1} parent=1 // pred_fallthru
      _
    // Predicated region
    $region6: #{tpu_custom_call.1} parent=1 // pred_check
      _
    $region7: #{tpu_custom_call.1} parent=1 // pred_check_branch
      %14 = sbr.rel (0) target = $region9
    $region8: #{tpu_custom_call.1} parent=1 // pred_region
      _
    $region9: #{tpu_custom_call.1} parent=1 // pred_fallthru
      _
    // Predicated region
    $region10: #{tpu_custom_call.1} parent=1 // pred_check
      _
    $region11: #{tpu_custom_call.1} parent=1 // pred_check_branch
      %16 = sbr.rel (0) target = $region13
    $region12: #{tpu_custom_call.1} parent=1 // pred_region
      _
    $region13: #{tpu_custom_call.1} parent=1 // pred_fallthru
      _
    // Predicated region
    $region14: #{tpu_custom_call.1} parent=1 // pred_check
      _
    $region15: #{tpu_custom_call.1} parent=1 // pred_check_branch
      %18 = sbr.rel (0) target = $region17
    $region16: #{tpu_custom_call.1} parent=1 // pred_region
      %s20 = ssub.s32 4096, 4096
      %21 = vsyncadd [#allocation3], %s20
      %s22 = sshll.u32 [#allocation2], 4
      %s23 = int_to_ptr.vmem [resolvable:$true] %s22
      %28 = dma.hbm_to_vmem [thread:$0]  %s3, 4096, %s23, [#allocation3], 128, 128, 8
    $region17: #{tpu_custom_call.1} parent=1 // pred_fallthru
      _
    // Predicated region
    $region18: #{tpu_custom_call.1} parent=1 // pred_check
      _
    $region19: #{tpu_custom_call.1} parent=1 // pred_check_branch
      %30 = sbr.rel (0) target = $region21
    $region20: #{tpu_custom_call.1} parent=1 // pred_region
      _
    $region21: #{tpu_custom_call.1} parent=1 // pred_fallthru
      _
    // Predicated region
    $region22: #{tpu_custom_call.1} parent=1 // pred_check
      _
    $region23: #{tpu_custom_call.1} parent=1 // pred_check_branch
      %32 = sbr.rel (0) target = $region25
    $region24: #{tpu_custom_call.1} parent=1 // pred_region
      %33 = dma.done [#allocation3], 4096
    $region25: #{tpu_custom_call.1} parent=1 // pred_fallthru
      _
    %v34 = vld [vmem:[%s0] sm:$0xff]
    %v35 = vld [vmem:[%s1] sm:$0xff]
    %v36 = vld [vmem:[%s2] sm:$0x3]
    %38 = vset.pattern.permute.xlu0 0
    %39 = vperm.xlu0 %38, %v34
    %v40 = vpop.permute.xlu0 %39
    %v43 = vlaneseq
    %v44 = vshrl.u32 %v43, 7
    %v45 = vsub.s32 0, %v44
    %v46 = vrot.slane %v35, %v45
    %v47 = vlaneseq
    %v48 = vshrl.u32 %v47, 7
    %v49 = vsub.s32 4, %v48
    %v50 = vrot.slane %v35, %v49
    %v53 = vlaneseq
    %v54 = vshrl.u32 %v53, 7
    %v55 = vsub.s32 0, %v54
    %v56 = vrot.slane %v46, %v55
    %v57 = vlaneseq
    %v58 = vshrl.u32 %v57, 7
    %v59 = vsub.s32 0, %v58
    %v60 = vrot.slane %v50, %v59
    %v61 = vmul.f32 %v40, %v56
    %v62 = vmul.f32 %v40, %v60
    %v64 = vlaneseq
    %v65 = vshrl.u32 %v64, 7
    %v66 = vsub.s32 0, %v65
    %v67 = vrot.slane %v36, %v66
    %v68 = vlaneseq
    %v69 = vshrl.u32 %v68, 7
    %v70 = vsub.s32 1, %v69
    %v71 = vrot.slane %v36, %v70
    %v74 = vadd.f32 %v67, %v61
    %v75 = vadd.f32 %v71, %v62
    %76 = vset.pattern.permute.xlu0 1
    %77 = vperm.xlu0 %76, %v34
    %v78 = vpop.permute.xlu0 %77
    %v80 = vlaneseq
    %v81 = vshrl.u32 %v80, 7
    %v82 = vsub.s32 1, %v81
    %v83 = vrot.slane %v35, %v82
    %v84 = vlaneseq
    %v85 = vshrl.u32 %v84, 7
    %v86 = vsub.s32 5, %v85
    %v87 = vrot.slane %v35, %v86
    %v90 = vlaneseq
    %v91 = vshrl.u32 %v90, 7
    %v92 = vsub.s32 1, %v91
    %v93 = vrot.slane %v83, %v92
    %v94 = vlaneseq
    %v95 = vshrl.u32 %v94, 7
    %v96 = vsub.s32 1, %v95
    %v97 = vrot.slane %v87, %v96
    %v98 = vmul.f32 %v78, %v93
    %v99 = vmul.f32 %v78, %v97
    %v100 = vadd.f32 %v74, %v98
    %v101 = vadd.f32 %v75, %v99
    %102 = vset.pattern.permute.xlu0 2
    %103 = vperm.xlu0 %102, %v34
    %v104 = vpop.permute.xlu0 %103
    %v106 = vlaneseq
    %v107 = vshrl.u32 %v106, 7
    %v108 = vsub.s32 2, %v107
    %v109 = vrot.slane %v35, %v108
    %v110 = vlaneseq
    %v111 = vshrl.u32 %v110, 7
    %v112 = vsub.s32 6, %v111
    %v113 = vrot.slane %v35, %v112
    %v116 = vlaneseq
    %v117 = vshrl.u32 %v116, 7
    %v118 = vsub.s32 2, %v117
    %v119 = vrot.slane %v109, %v118
    %v120 = vlaneseq
    %v121 = vshrl.u32 %v120, 7
    %v122 = vsub.s32 2, %v121
    %v123 = vrot.slane %v113, %v122
    %v124 = vmul.f32 %v104, %v119
    %v125 = vmul.f32 %v104, %v123
    %v126 = vadd.f32 %v100, %v124
    %v127 = vadd.f32 %v101, %v125
    %128 = vset.pattern.permute.xlu0 3
    %129 = vperm.xlu0 %128, %v34
    %v130 = vpop.permute.xlu0 %129
    %v132 = vlaneseq
    %v133 = vshrl.u32 %v132, 7
    %v134 = vsub.s32 3, %v133
    %v135 = vrot.slane %v35, %v134
    %v136 = vlaneseq
    %v137 = vshrl.u32 %v136, 7
    %v138 = vsub.s32 7, %v137
    %v139 = vrot.slane %v35, %v138
    %v142 = vlaneseq
    %v143 = vshrl.u32 %v142, 7
    %v144 = vsub.s32 3, %v143
    %v145 = vrot.slane %v135, %v144
    %v146 = vlaneseq
    %v147 = vshrl.u32 %v146, 7
    %v148 = vsub.s32 3, %v147
    %v149 = vrot.slane %v139, %v148
    %v150 = vmul.f32 %v130, %v145
    %v151 = vmul.f32 %v130, %v149
    %v152 = vadd.f32 %v126, %v150
    %v153 = vadd.f32 %v127, %v151
    %v154 = vmax.f32 %v152, 0.0
    %v155 = vmax.f32 %v153, 0.0
    %v156 = vld [vmem:[#allocation2] sm:$0xff]
    %v157 = vld [vmem:[#allocation2 + $0x8] sm:$0xff]
    %v158 = vld [vmem:[#allocation2 + $0x10] sm:$0xff]
    %v159 = vld [vmem:[#allocation2 + $0x18] sm:$0xff]
    %v160 = vld [vmem:[#allocation2 + $0x20] sm:$0xff]
    %v161 = vld [vmem:[#allocation2 + $0x28] sm:$0xff]
    %v162 = vld [vmem:[#allocation2 + $0x30] sm:$0xff]
    %v163 = vld [vmem:[#allocation2 + $0x38] sm:$0xff]
    %v164 = vld [vmem:[#allocation2 + $0x40] sm:$0xff]
    %v165 = vld [vmem:[#allocation2 + $0x48] sm:$0xff]
    %v166 = vld [vmem:[#allocation2 + $0x50] sm:$0xff]
    %v167 = vld [vmem:[#allocation2 + $0x58] sm:$0xff]
    %v168 = vld [vmem:[#allocation2 + $0x60] sm:$0xff]
    %v169 = vld [vmem:[#allocation2 + $0x68] sm:$0xff]
    %v170 = vld [vmem:[#allocation2 + $0x70] sm:$0xff]
    %v171 = vld [vmem:[#allocation2 + $0x78] sm:$0xff]
    %v172 = vld [vmem:[#allocation2 + $0x80] sm:$0xff]
    %v173 = vld [vmem:[#allocation2 + $0x88] sm:$0xff]
    %v174 = vld [vmem:[#allocation2 + $0x90] sm:$0xff]
    %v175 = vld [vmem:[#allocation2 + $0x98] sm:$0xff]
    %v176 = vld [vmem:[#allocation2 + $0xa0] sm:$0xff]
    %v177 = vld [vmem:[#allocation2 + $0xa8] sm:$0xff]
    %v178 = vld [vmem:[#allocation2 + $0xb0] sm:$0xff]
    %v179 = vld [vmem:[#allocation2 + $0xb8] sm:$0xff]
    %v180 = vld [vmem:[#allocation2 + $0xc0] sm:$0xff]
    %v181 = vld [vmem:[#allocation2 + $0xc8] sm:$0xff]
    %v182 = vld [vmem:[#allocation2 + $0xd0] sm:$0xff]
    %v183 = vld [vmem:[#allocation2 + $0xd8] sm:$0xff]
    %v184 = vld [vmem:[#allocation2 + $0xe0] sm:$0xff]
    %v185 = vld [vmem:[#allocation2 + $0xe8] sm:$0xff]
    %v186 = vld [vmem:[#allocation2 + $0xf0] sm:$0xff]
    %v187 = vld [vmem:[#allocation2 + $0xf8] sm:$0xff]
    %v188 = vld [vmem:[%s4] sm:$0x1]
    %v190 = vlaneseq
    %v191 = vshrl.u32 %v190, 7
    %v192 = vsub.s32 0, %v191
    %v193 = vrot.slane %v188, %v192
    %195 = vmatprep.subr.mxu0 0.0
    %196 = vmatpush1.msra.mxu0 %v156
    %197 = vmatprep.subr.mxu0 0.0
    %198 = vmatpush1.msra.mxu0 %v157
    %199 = vmatprep.subr.mxu0 0.0
    %200 = vmatpush1.msra.mxu0 %v158
    %201 = vmatprep.subr.mxu0 0.0
    %202 = vmatpush1.msra.mxu0 %v159
    %203 = vmatprep.subr.mxu0 0.0
    %204 = vmatpush1.msra.mxu0 %v160
    %205 = vmatprep.subr.mxu0 0.0
    %206 = vmatpush1.msra.mxu0 %v161
    %207 = vmatprep.subr.mxu0 0.0
    %208 = vmatpush1.msra.mxu0 %v162
    %209 = vmatprep.subr.mxu0 0.0
    %210 = vmatpush1.msra.mxu0 %v163
    %211 = vmatprep.subr.mxu0 0.0
    %212 = vmatpush1.msra.mxu0 %v164
    %213 = vmatprep.subr.mxu0 0.0
    %214 = vmatpush1.msra.mxu0 %v165
    %215 = vmatprep.subr.mxu0 0.0
    %216 = vmatpush1.msra.mxu0 %v166
    %217 = vmatprep.subr.mxu0 0.0
    %218 = vmatpush1.msra.mxu0 %v167
    %219 = vmatprep.subr.mxu0 0.0
    %220 = vmatpush1.msra.mxu0 %v168
    %221 = vmatprep.subr.mxu0 0.0
    %222 = vmatpush1.msra.mxu0 %v169
    %223 = vmatprep.subr.mxu0 0.0
    %224 = vmatpush1.msra.mxu0 %v170
    %225 = vmatprep.subr.mxu0 0.0
    %226 = vmatpush1.msra.mxu0 %v171
    %227 = vmatprep.subr.mxu0 0.0
    %228 = vmatpush1.msra.mxu0 %v172
    %229 = vmatprep.subr.mxu0 0.0
    %230 = vmatpush1.msra.mxu0 %v173
    %231 = vmatprep.subr.mxu0 0.0
    %232 = vmatpush1.msra.mxu0 %v174
    %233 = vmatprep.subr.mxu0 0.0
    %234 = vmatpush1.msra.mxu0 %v175
    %235 = vmatprep.subr.mxu0 0.0
    %236 = vmatpush1.msra.mxu0 %v176
    %237 = vmatprep.subr.mxu0 0.0
    %238 = vmatpush1.msra.mxu0 %v177
    %239 = vmatprep.subr.mxu0 0.0
    %240 = vmatpush1.msra.mxu0 %v178
    %241 = vmatprep.subr.mxu0 0.0
    %242 = vmatpush1.msra.mxu0 %v179
    %243 = vmatprep.subr.mxu0 0.0
    %244 = vmatpush1.msra.mxu0 %v180
    %245 = vmatprep.subr.mxu0 0.0
    %246 = vmatpush1.msra.mxu0 %v181
    %247 = vmatprep.subr.mxu0 0.0
    %248 = vmatpush1.msra.mxu0 %v182
    %249 = vmatprep.subr.mxu0 0.0
    %250 = vmatpush1.msra.mxu0 %v183
    %251 = vmatprep.subr.mxu0 0.0
    %252 = vmatpush1.msra.mxu0 %v184
    %253 = vmatprep.subr.mxu0 0.0
    %254 = vmatpush1.msra.mxu0 %v185
    %255 = vmatprep.subr.mxu0 0.0
    %256 = vmatpush1.msra.mxu0 %v186
    %257 = vmatprep.subr.mxu0 0.0
    %258 = vmatpush1.msra.mxu0 %v187
    %259 = vmatprep.mubr.f32.mxu0 %v155
    %260 = vmatmul.mubr.f32.gmra.mrb[0].mxu0 %v154
    %v261 = vpop.f32.mrb[0].mxu0
    %v262 = vadd.f32 %v193, %v261
    %v263 = vpop.f32.mrb[0].mxu0
    %264 = vdwg.mxu0
    %vm265 = vcmask 15360
    %266 = vst.msk [vmem:[%s5] sm:$0xff] %vm265, %v262
    // Predicated region
    $region26: #{tpu_custom_call.1} parent=1 // pred_check
      _
    $region27: #{tpu_custom_call.1} parent=1 // pred_check_branch
      %268 = sbr.rel (0) target = $region29
    $region28: #{tpu_custom_call.1} parent=1 // pred_region
      _
    $region29: #{tpu_custom_call.1} parent=1 // pred_fallthru
      _
    // Predicated region
    $region30: #{tpu_custom_call.1} parent=1 // pred_check
      _
    $region31: #{tpu_custom_call.1} parent=1 // pred_check_branch
      %270 = sbr.rel (0) target = $region33
    $region32: #{tpu_custom_call.1} parent=1 // pred_region
      _
    $region33: #{tpu_custom_call.1} parent=1 // pred_fallthru
      _
    %271 = vsyncpa [#allocation3], 1

</llo_original>
